<compile_context>
chip_gen: v5e
topology: v5e:2x2
jax: 0.10.0
libtpu: 0.0.40
codegen_flags: <defaults>
</compile_context>

<pallas_src>
import functools

import jax
import jax.numpy as jnp
from jax.experimental import pallas as pl
from jax.experimental.pallas import tpu as pltpu


def _round_up(x, m):
    return ((x + m - 1) // m) * m


def _cdiv(a, b):
    return -(-a // b)


def _socs_kernel(x_ref, w1_ref, b1_ref, w2_ref, idx_ref, out_ref, m_acc, *,
                 compute_dtype):
    step = pl.program_id(1)

    @pl.when(step == 0)
    def _():
        m_acc[...] = jnp.zeros_like(m_acc)

    # ---- first (wide) matmul + SiLU: hot path on MXU/EUP ----
    x = x_ref[...]                            # [tile_a, n_in]
    if compute_dtype is not None and x.dtype != compute_dtype:
        x = x.astype(compute_dtype)           # per-tile cast (x streams through VMEM)
    h = jnp.dot(x, w1_ref[...], preferred_element_type=jnp.float32) + b1_ref[...]
    # SiLU with exp + reciprocal on the EUP slot (exact reciprocal on the f32 path).
    h = h * pl.reciprocal(1.0 + jnp.exp(-h), approx=compute_dtype is not None)

    # ---- segment-sum of h via one-hot matmul, accumulated across atom tiles ----
    seg_dtype = jnp.float32 if compute_dtype is None else compute_dtype
    idx = idx_ref[0]                          # [1, tile_a] int32 (padded atoms = maxm sentinel)
    maxm = out_ref.shape[0]
    tile_a = idx.shape[-1]
    mol_iota = jax.lax.broadcasted_iota(jnp.int32, (maxm, tile_a), 0)
    onehot = (mol_iota == idx).astype(seg_dtype)        # 0/1 is exact in bf16
    m_acc[...] += jnp.dot(onehot, h.astype(seg_dtype),
                          preferred_element_type=jnp.float32)

    # ---- finalize: run the n_out-narrow matmul once per split, not per atom tile ----
    @pl.when(step == pl.num_programs(1) - 1)
    def _():
        out_ref[...] = jnp.dot(m_acc[...], w2_ref[...],
                               preferred_element_type=jnp.float32)


def _default_num_splits():
    # v7x has 2 TensorCores per chip; shard the (HBM-bound) atom-streaming axis across them.
    try:
        kind = jax.devices()[0].device_kind.lower()
    except Exception:
        return 1
    return 2 if "v7" in kind else 1


def socs_forward(inputs, params, *, max_m=None, tile_a=None,
                 compute_dtype=jnp.bfloat16, num_splits=None):
    """Pallas implementation of SOCs.forward. Returns inputs dict + 'socs'.

    max_m: number of molecules (static). If None, falls back to the module's
           `int(idx_m[-1]) + 1`, which costs a host sync + retrace per shape.
    """
    # Keep x in its incoming dtype (bf16 producers stream half the bytes; do NOT add a
    # standalone f32->bf16 astype here -- that would add an extra HBM pass).
    x = jnp.asarray(inputs["scalar_representation"])         # [n_atoms, n_in]
    idx_m = jnp.asarray(inputs["_idx_m"], jnp.int32)          # [n_atoms]
    if max_m is None:
        max_m = int(idx_m[-1]) + 1       # host sync; prefer passing max_m statically
    maxm = int(max_m)

    n_atoms, n_in = x.shape
    w1 = jnp.asarray(params["w1"], jnp.float32)
    b1 = jnp.asarray(params["b1"], jnp.float32).reshape(1, -1)
    w2 = jnp.asarray(params["w2"], jnp.float32)
    b2 = jnp.asarray(params["b2"], jnp.float32).reshape(1, -1)
    n_hidden = w1.shape[1]
    n_out = w2.shape[1]

    if compute_dtype is not None:
        w1 = w1.astype(compute_dtype)    # cast resident weight once, not per grid step

    if num_splits is None:
        num_splits = _default_num_splits()
    num_splits = max(1, int(num_splits))

    x_bytes = x.dtype.itemsize
    w1_bytes = w1.dtype.itemsize
    seg_bytes = 2 if compute_dtype is not None else 4
    sub = max(8, (32 // x_bytes) if x_bytes else 8)    # sublane multiple: 8 f32, 16 bf16
    f32 = 4

    def vmem_estimate(ta):
        return (
            2 * ta * n_in * x_bytes                                         # x double buffer
            + 2 * 8 * _round_up(ta, 128) * 4                                # idx double buffer
            + _round_up(n_in, 8) * _round_up(n_hidden, 128) * w1_bytes      # w1 (resident)
            + 8 * _round_up(n_hidden, 128) * f32                            # b1
            + _round_up(n_hidden, 8) * _round_up(n_out, 128) * f32          # w2
            + _round_up(maxm, 8) * _round_up(n_out, 128) * f32              # out block
            + _round_up(maxm, 8) * _round_up(n_hidden, 128) * f32           # m_acc scratch
            + _round_up(ta, 8) * _round_up(n_hidden, 128) * f32             # h temporary
            + _round_up(maxm, 8) * _round_up(ta, 128) * seg_bytes           # onehot temporary
            + (ta * n_in * 2 if compute_dtype is not None else 0)           # bf16 x copy
        )

    # ---- atom tile: 512-1024 already saturates HBM BW; shrink if the [maxm, tile_a]
    #      one-hot / total VMEM would blow the (v7x-safe) budget.
    if tile_a is None:
        cap = 1024
        while cap > 256 and vmem_estimate(cap) > (40 << 20):
            cap //= 2
        if n_atoms <= cap:
            tile_a = _round_up(max(n_atoms, 1), sub)
        else:
            tile_a = cap                 # multiple of 128
    else:
        tile_a = _round_up(int(tile_a), sub)

    n_tiles = _cdiv(max(n_atoms, 1), tile_a)
    tiles_per_split = _cdiv(n_tiles, num_splits)
    n_pad = num_splits * tiles_per_split * tile_a

    # Pad atoms: x rows -> 0, idx -> maxm sentinel (never matches a molecule row).
    x_p = jnp.pad(x, ((0, n_pad - n_atoms), (0, 0)))
    idx_p = jnp.pad(idx_m, (0, n_pad - n_atoms), constant_values=maxm)
    idx_p = idx_p.reshape(num_splits * tiles_per_split, 1, tile_a)

    in_specs = [
        pl.BlockSpec((tile_a, n_in),
                     lambda s, i: (s * tiles_per_split + i, 0)),       # x: streamed atom tiles
        pl.BlockSpec((n_in, n_hidden), lambda s, i: (0, 0)),           # w1: resident
        pl.BlockSpec((1, n_hidden), lambda s, i: (0, 0)),              # b1: resident
        pl.BlockSpec((n_hidden, n_out), lambda s, i: (0, 0)),          # w2: resident
        pl.BlockSpec((1, 1, tile_a),
                     lambda s, i: (s * tiles_per_split + i, 0, 0)),    # idx: streamed with x
    ]
    # Per-split partial output; leading dim squeezed out of the kernel ref.
    out_specs = pl.BlockSpec((None, maxm, n_out), lambda s, i: (s, 0, 0))
    scratch_shapes = [
        pltpu.VMEM((maxm, n_hidden), jnp.float32),     # segment_sum(h) accumulator
    ]

    vmem_limit = int(min(48 << 20, max(32 << 20, 2 * vmem_estimate(tile_a))))

    cost = pl.CostEstimate(
        flops=(2 * n_pad * n_in * n_hidden
               + 2 * n_pad * maxm * n_hidden
               + num_splits * 2 * maxm * n_hidden * n_out),
        transcendentals=n_pad * n_hidden,
        bytes_accessed=(n_pad * n_in * x_bytes + n_pad * 4
                        + n_in * n_hidden * w1_bytes + n_hidden * 4
                        + n_hidden * n_out * 4
                        + num_splits * maxm * n_out * 4),
    )

    kernel = functools.partial(_socs_kernel, compute_dtype=compute_dtype)
    y_parts = pl.pallas_call(
        kernel,
        out_shape=jax.ShapeDtypeStruct((num_splits, maxm, n_out), jnp.float32),
        grid_spec=pltpu.PrefetchScalarGridSpec(
            num_scalar_prefetch=0,
            grid=(num_splits, tiles_per_split),
            in_specs=in_specs,
            out_specs=out_specs,
            scratch_shapes=scratch_shapes,
        ),
        compiler_params=pltpu.CompilerParams(
            dimension_semantics=("parallel", "arbitrary"),
            vmem_limit_bytes=vmem_limit,
        ),
        cost_estimate=cost,
    )(x_p, w1, b1, w2, idx_p)

    # segment_sum(h @ W2 + b2) == segment_sum(h) @ W2 + counts * b2.  The counts term
    # depends only on idx_m, so it is computed outside the kernel (tiny XLA op),
    # removing the per-tile cross-lane count reduce from the kernel's critical path.
    counts = jax.ops.segment_sum(jnp.ones((n_atoms,), jnp.float32), idx_m,
                                 num_segments=maxm)
    y_mol = jnp.sum(y_parts, axis=0) + counts[:, None] * b2

    out = dict(inputs)
    out["socs"] = y_mol
    return out


def init_params(key, n_in, n_out):
    # schnetpack build_mlp(n_in, n_out, n_hidden=None, n_layers=2):
    #   hidden width = max(n_out, n_in // 2)
    n_hidden = max(n_out, n_in // 2)
    k1, k2, k3, k4 = jax.random.split(key, 4)
    w1 = jax.random.normal(k1, (n_in, n_hidden), jnp.float32) / jnp.sqrt(n_in)
    b1 = jax.random.normal(k2, (1, n_hidden), jnp.float32) * 0.01
    w2 = jax.random.normal(k3, (n_hidden, n_out), jnp.float32) / jnp.sqrt(n_hidden)
    b2 = jax.random.normal(k4, (1, n_out), jnp.float32) * 0.01
    return {"w1": w1, "b1": b1, "w2": w2, "b2": b2}


def socs_reference(inputs, params, max_m):
    """Pure-JAX reference for correctness checking."""
    x = jnp.asarray(inputs["scalar_representation"], jnp.float32)
    idx_m = jnp.asarray(inputs["_idx_m"], jnp.int32)
    h = x @ params["w1"] + params["b1"]
    h = h * jax.nn.sigmoid(h)
    y = h @ params["w2"] + params["b2"]
    return jax.ops.segment_sum(y, idx_m, num_segments=max_m)


if __name__ == "__main__":
    key = jax.random.PRNGKey(0)
    k_x, k_p = jax.random.split(key)

    n_atoms, n_in, n_out = 19, 32, 4
    maxm = 2
    x = jax.random.normal(k_x, (n_atoms, n_in), jnp.float32)
    # two molecules: 11 atoms in molecule 0, 8 in molecule 1 (sorted, as in schnetpack)
    idx_m = jnp.array([0] * 11 + [1] * 8, dtype=jnp.int32)

    params = init_params(k_p, n_in, n_out)
    inputs = {"scalar_representation": x, "_idx_m": idx_m}
    y_ref = socs_reference(inputs, params, maxm)

    # Default path: bf16 MXU operands (x tile, w1, onehot/h), f32 accumulate.
    out = socs_forward(inputs, params, max_m=maxm)
    y = jax.block_until_ready(out["socs"])
    assert y.shape == (maxm, n_out)
    assert jnp.allclose(y, y_ref, atol=5e-2, rtol=5e-2), (y, y_ref)

    # Forced multi-tile path (3 atom tiles) in pure f32: exercises the resident
    # accumulator, padding and finalize, and matches the reference tightly.
    out32 = socs_forward(inputs, params, max_m=maxm, tile_a=8, compute_dtype=None)
    y32 = jax.block_until_ready(out32["socs"])
    assert jnp.allclose(y32, y_ref, atol=1e-4, rtol=1e-4), (y32, y_ref)

    # Forced 2-way split (v7x megacore layout) in f32: exercises the parallel split
    # axis, per-split partial outputs and the wrapper-side partial sum.
    out_mc = socs_forward(inputs, params, max_m=maxm, tile_a=8,
                          compute_dtype=None, num_splits=2)
    y_mc = jax.block_until_ready(out_mc["socs"])
    assert jnp.allclose(y_mc, y_ref, atol=1e-4, rtol=1e-4), (y_mc, y_ref)

    print("KERNEL_OK")
</pallas_src>

<mosaic_0001>
module attributes {stable_mosaic.version = 11 : i64} {
  func.func @_socs_kernel(%arg0: i32, %arg1: i32, %arg2: memref<24x32xf32, #tpu.memory_space<vmem>>, %arg3: memref<32x16xbf16, #tpu.memory_space<vmem>>, %arg4: memref<1x16xf32, #tpu.memory_space<vmem>>, %arg5: memref<16x4xf32, #tpu.memory_space<vmem>>, %arg6: memref<1x1x24xi32, #tpu.memory_space<vmem>>, %arg7: memref<1x2x4xf32, #tpu.memory_space<vmem>>, %arg8: memref<2x16xf32, #tpu.memory_space<vmem>>) attributes {dimension_semantics = [#tpu.dimension_semantics<parallel>, #tpu.dimension_semantics<arbitrary>], iteration_bounds = array<i64: 1, 1>, scalar_prefetch = 0 : i64, scratch_operands = 1 : i64, tpu.core_type = #tpu.core_type<tc>, window_params = [{transform_indices = @transform_0, window_bounds = array<i64: 24, 32>}, {pipeline_mode = #tpu.pipeline_mode<synchronous>, transform_indices = @transform_1, window_bounds = array<i64: 32, 16>}, {pipeline_mode = #tpu.pipeline_mode<synchronous>, transform_indices = @transform_2, window_bounds = array<i64: 1, 16>}, {pipeline_mode = #tpu.pipeline_mode<synchronous>, transform_indices = @transform_3, window_bounds = array<i64: 16, 4>}, {transform_indices = @transform_4, window_bounds = array<i64: 1, 1, 24>}, {transform_indices = @transform_5, window_bounds = array<i64: 1, 2, 4>}]} {
    %c0_i32 = arith.constant 0 : i32
    %0 = arith.cmpi eq, %arg1, %c0_i32 : i32
    %1 = arith.extui %0 : i1 to i32
    %c0_i32_0 = arith.constant 0 : i32
    %2 = arith.cmpi ne, %1, %c0_i32_0 : i32
    scf.if %2 {
      %cst_18 = arith.constant 0.000000e+00 : f32
      %33 = vector.broadcast %cst_18 : f32 to vector<2x16xf32>
      %c0_19 = arith.constant 0 : index
      %c0_20 = arith.constant 0 : index
      %34 = vector.load %arg8[%c0_19, %c0_20] : memref<2x16xf32, #tpu.memory_space<vmem>>, vector<2x16xf32>
      tpu.vector_store %arg8[%c0_19, %c0_20], %33 {strides = array<i32>} : memref<2x16xf32, #tpu.memory_space<vmem>>, vector<2x16xf32>,
    } else {
    }
    %c0 = arith.constant 0 : index
    %c0_1 = arith.constant 0 : index
    %3 = vector.load %arg2[%c0, %c0_1] : memref<24x32xf32, #tpu.memory_space<vmem>>, vector<24x32xf32>
    %4 = arith.truncf %3 : vector<24x32xf32> to vector<24x32xbf16>
    %c0_2 = arith.constant 0 : index
    %c0_3 = arith.constant 0 : index
    %5 = vector.load %arg3[%c0_2, %c0_3] : memref<32x16xbf16, #tpu.memory_space<vmem>>, vector<32x16xbf16>
    %cst = arith.constant dense<0.000000e+00> : vector<24x16xf32>
    %6 = tpu.matmul %4, %5, %cst {dimension_numbers = #tpu.dot_dimension_numbers<[1], [0], [0], [1], [0, 0, 1, 1], [], []>} : vector<24x32xbf16>, vector<32x16xbf16>, vector<24x16xf32> -> vector<24x16xf32>
    %c0_4 = arith.constant 0 : index
    %c0_5 = arith.constant 0 : index
    %7 = vector.load %arg4[%c0_4, %c0_5] : memref<1x16xf32, #tpu.memory_space<vmem>>, vector<1x16xf32>
    %8 = vector.broadcast %7 : vector<1x16xf32> to vector<24x16xf32>
    %9 = arith.addf %6, %8 : vector<24x16xf32>
    %cst_6 = arith.constant 0.000000e+00 : f32
    %10 = vector.broadcast %cst_6 : f32 to vector<24x16xf32>
    %11 = arith.subf %10, %9 : vector<24x16xf32>
    %12 = math.exp %11 : vector<24x16xf32>
    %cst_7 = arith.constant 1.000000e+00 : f32
    %13 = vector.broadcast %cst_7 : f32 to vector<24x16xf32>
    %14 = arith.addf %13, %12 : vector<24x16xf32>
    %15 = tpu.reciprocal %14 {approx = true} : vector<24x16xf32> -> vector<24x16xf32>
    %16 = arith.mulf %9, %15 : vector<24x16xf32>
    %c0_8 = arith.constant 0 : index
    %c0_9 = arith.constant 0 : index
    %c0_10 = arith.constant 0 : index
    %17 = vector.load %arg6[%c0_8, %c0_9, %c0_10] : memref<1x1x24xi32, #tpu.memory_space<vmem>>, vector<1x1x24xi32>
    %18 = vector.shape_cast %17 : vector<1x1x24xi32> to vector<1x24xi32>
    %19 = tpu.iota {dimensions = array<i32: 0>} : vector<2x24xi32>
    %20 = vector.broadcast %18 : vector<1x24xi32> to vector<2x24xi32>
    %21 = arith.cmpi eq, %19, %20 : vector<2x24xi32>
    %22 = arith.extui %21 : vector<2x24xi1> to vector<2x24xi32>
    %23 = arith.sitofp %22 : vector<2x24xi32> to vector<2x24xf32>
    %24 = arith.truncf %23 : vector<2x24xf32> to vector<2x24xbf16>
    %c0_11 = arith.constant 0 : index
    %c0_12 = arith.constant 0 : index
    %25 = vector.load %arg8[%c0_11, %c0_12] : memref<2x16xf32, #tpu.memory_space<vmem>>, vector<2x16xf32>
    %26 = arith.truncf %16 : vector<24x16xf32> to vector<24x16xbf16>
    %cst_13 = arith.constant dense<0.000000e+00> : vector<2x16xf32>
    %27 = tpu.matmul %24, %26, %cst_13 {dimension_numbers = #tpu.dot_dimension_numbers<[1], [0], [0], [1], [0, 0, 1, 1], [], []>} : vector<2x24xbf16>, vector<24x16xbf16>, vector<2x16xf32> -> vector<2x16xf32>
    %28 = arith.addf %25, %27 : vector<2x16xf32>
    %c0_14 = arith.constant 0 : index
    %c0_15 = arith.constant 0 : index
    %29 = vector.load %arg8[%c0_14, %c0_15] : memref<2x16xf32, #tpu.memory_space<vmem>>, vector<2x16xf32>
    tpu.vector_store %arg8[%c0_14, %c0_15], %28 {strides = array<i32>} : memref<2x16xf32, #tpu.memory_space<vmem>>, vector<2x16xf32>,
    %c0_i32_16 = arith.constant 0 : i32
    %30 = arith.cmpi eq, %arg1, %c0_i32_16 : i32
    %31 = arith.extui %30 : i1 to i32
    %c0_i32_17 = arith.constant 0 : i32
    %32 = arith.cmpi ne, %31, %c0_i32_17 : i32
    scf.if %32 {
      %c0_18 = arith.constant 0 : index
      %c0_19 = arith.constant 0 : index
      %33 = vector.load %arg8[%c0_18, %c0_19] : memref<2x16xf32, #tpu.memory_space<vmem>>, vector<2x16xf32>
      %c0_20 = arith.constant 0 : index
      %c0_21 = arith.constant 0 : index
      %34 = vector.load %arg5[%c0_20, %c0_21] : memref<16x4xf32, #tpu.memory_space<vmem>>, vector<16x4xf32>
      %cst_22 = arith.constant dense<0.000000e+00> : vector<2x4xf32>
      %35 = tpu.matmul %33, %34, %cst_22 {dimension_numbers = #tpu.dot_dimension_numbers<[1], [0], [0], [1], [0, 0, 1, 1], [], []>} : vector<2x16xf32>, vector<16x4xf32>, vector<2x4xf32> -> vector<2x4xf32>
      %c0_23 = arith.constant 0 : index
      %c0_24 = arith.constant 0 : index
      %c0_25 = arith.constant 0 : index
      %36 = vector.load %arg7[%c0_23, %c0_24, %c0_25] : memref<1x2x4xf32, #tpu.memory_space<vmem>>, vector<1x2x4xf32>
      %37 = vector.shape_cast %36 : vector<1x2x4xf32> to vector<2x4xf32>
      %38 = vector.shape_cast %35 : vector<2x4xf32> to vector<1x2x4xf32>
      tpu.vector_store %arg7[%c0_23, %c0_24, %c0_25], %38 {strides = array<i32>} : memref<1x2x4xf32, #tpu.memory_space<vmem>>, vector<1x2x4xf32>,
    } else {
    }
    return
  }
  func.func @transform_0(%arg0: i32, %arg1: i32) -> (i32, i32) {
    %c1_i32 = arith.constant 1 : i32
    %0 = arith.muli %arg0, %c1_i32 : i32
    %1 = arith.addi %0, %arg1 : i32
    %c0_i32 = arith.constant 0 : i32
    %c0_i32_0 = arith.constant 0 : i32
    return %1, %c0_i32 : i32, i32
  }
  func.func @transform_1(%arg0: i32, %arg1: i32) -> (i32, i32) {
    %c0_i32 = arith.constant 0 : i32
    %c0_i32_0 = arith.constant 0 : i32
    %c0_i32_1 = arith.constant 0 : i32
    return %c0_i32, %c0_i32_0 : i32, i32
  }
  func.func @transform_2(%arg0: i32, %arg1: i32) -> (i32, i32) {
    %c0_i32 = arith.constant 0 : i32
    %c0_i32_0 = arith.constant 0 : i32
    %c0_i32_1 = arith.constant 0 : i32
    return %c0_i32, %c0_i32_0 : i32, i32
  }
  func.func @transform_3(%arg0: i32, %arg1: i32) -> (i32, i32) {
    %c0_i32 = arith.constant 0 : i32
    %c0_i32_0 = arith.constant 0 : i32
    %c0_i32_1 = arith.constant 0 : i32
    return %c0_i32, %c0_i32_0 : i32, i32
  }
  func.func @transform_4(%arg0: i32, %arg1: i32) -> (i32, i32, i32) {
    %c1_i32 = arith.constant 1 : i32
    %0 = arith.muli %arg0, %c1_i32 : i32
    %1 = arith.addi %0, %arg1 : i32
    %c0_i32 = arith.constant 0 : i32
    %c0_i32_0 = arith.constant 0 : i32
    %c0_i32_1 = arith.constant 0 : i32
    return %1, %c0_i32, %c0_i32_0 : i32, i32, i32
  }
  func.func @transform_5(%arg0: i32, %arg1: i32) -> (i32, i32, i32) {
    %c0_i32 = arith.constant 0 : i32
    %c0_i32_0 = arith.constant 0 : i32
    %c0_i32_1 = arith.constant 0 : i32
    return %arg0, %c0_i32, %c0_i32_0 : i32, i32, i32
  }
}

</mosaic_0001>

<llo_original>
// kernel: tpu_custom_call.1
$region0: #{tpu_custom_call.1}
  #allocation0 [shape = 'u32[]', space=smem, size = 0x4, offset = 0x4, fixed_abs, tag = 'smem constant byte address 0x4 - core index']
  #allocation1 [shape = 'u32[72,128]{1,0:T(1,128)}', space=vmem, size = 0x9000, scoped, tag = 'internal scratch']
  #allocation2 [shape = 'f32[2,16]{1,0:T(2,128)}', space=vmem, size = 0x400, scoped, tag = 'scratch operand']
  %s0 = inlined_call_operand.vmem [shape: f32[24,32], index: 0, kind: input, shape index: {}]
  %s1 = inlined_call_operand.vmem [shape: bf16[32,16], index: 1, kind: input, shape index: {}]
  %s2 = inlined_call_operand.vmem [shape: f32[1,16], index: 2, kind: input, shape index: {}]
  %s3 = inlined_call_operand.vmem [shape: f32[16,4], index: 3, kind: input, shape index: {}]
  %s4 = inlined_call_operand.vmem [shape: s32[1,1,24], index: 4, kind: input, shape index: {}]
  %s5 = inlined_call_operand.hbm [shape: f32[1,2,4], index: 5, kind: output, shape index: {}]
  %s6 = sld [smem:[#allocation0]]
  $region38: #{tpu_custom_call.1} parent=0
    _
  %s8 = ssub.s32 1, %s6
  %s9 = scalar_select 0, %s8, %s6
  $region1: #{tpu_custom_call.1} parent=0
    #allocation3 [shape = 'u8[1024]{0}', space=vmem, size = 0x400, scoped, tag = 'output window, operand 0, single buffered']
    #allocation4 [shape = 's32[1]{0}', space=sflag, size = 0x4, scoped, tag = 'scoped memory for tpu_custom_call.1']
    %10 = vsyncpa [#allocation4], 0
    // Predicated region
    $region2: #{tpu_custom_call.1} parent=1 // pred_check
      _
    $region3: #{tpu_custom_call.1} parent=1 // pred_check_branch
      %12 = sbr.rel (0) target = $region5
    $region4: #{tpu_custom_call.1} parent=1 // pred_region
      %s13 = sadd.s32 0, 0
      %s14 = smul.u32 3, %s13
      %p15 = scmp.lt.s32.totalorder %s14, 2
      %s16 = scalar_select %p15, %s14, 2
      %s17 = smul.addr %s16, 8
      %s18 = scalar_lea.vmem %s0, %s17
      %s19 = sadd.s32 0, 0
      %s20 = smul.u32 3, %s19
    $region5: #{tpu_custom_call.1} parent=1 // pred_fallthru
      _
    // Predicated region
    $region6: #{tpu_custom_call.1} parent=1 // pred_check
      _
    $region7: #{tpu_custom_call.1} parent=1 // pred_check_branch
      %22 = sbr.rel (0) target = $region9
    $region8: #{tpu_custom_call.1} parent=1 // pred_region
      _
    $region9: #{tpu_custom_call.1} parent=1 // pred_fallthru
      _
    // Predicated region
    $region10: #{tpu_custom_call.1} parent=1 // pred_check
      _
    $region11: #{tpu_custom_call.1} parent=1 // pred_check_branch
      %24 = sbr.rel (0) target = $region13
    $region12: #{tpu_custom_call.1} parent=1 // pred_region
      _
    $region13: #{tpu_custom_call.1} parent=1 // pred_fallthru
      _
    // Predicated region
    $region14: #{tpu_custom_call.1} parent=1 // pred_check
      _
    $region15: #{tpu_custom_call.1} parent=1 // pred_check_branch
      %26 = sbr.rel (0) target = $region17
    $region16: #{tpu_custom_call.1} parent=1 // pred_region
      _
    $region17: #{tpu_custom_call.1} parent=1 // pred_fallthru
      _
    // Predicated region
    $region18: #{tpu_custom_call.1} parent=1 // pred_check
      _
    $region19: #{tpu_custom_call.1} parent=1 // pred_check_branch
      %28 = sbr.rel (0) target = $region21
    $region20: #{tpu_custom_call.1} parent=1 // pred_region
      %s29 = sadd.s32 0, 0
      %p30 = scmp.lt.s32.totalorder %s29, 0
      %s31 = scalar_select %p30, %s29, 0
      %s32 = scalar_lea.vmem %s4, %s31
      %s33 = sadd.s32 0, 0
    $region21: #{tpu_custom_call.1} parent=1 // pred_fallthru
      _
    %s34 = sadd.s32 0, 0
    %s35 = smul.u32 3, %s34
    %p36 = scmp.lt.s32.totalorder %s35, 2
    %s37 = scalar_select %p36, %s35, 2
    %s38 = smul.addr %s37, 8
    %s39 = scalar_lea.vmem %s0, %s38
    %s40 = sadd.s32 0, 0
    %p41 = scmp.lt.s32.totalorder %s40, 0
    %s42 = scalar_select %p41, %s40, 0
    %s43 = scalar_lea.vmem %s4, %s42
    %s44 = sadd.s32 0, 0
    %s45 = smul.u32 3, %s44
    %p46 = scmp.lt.s32.totalorder %s45, 2
    %s47 = scalar_select %p46, %s45, 2
    %s48 = smul.addr %s47, 8
    %s49 = scalar_lea.vmem %s0, %s48
    %s50 = sadd.s32 0, 0
    %s51 = smul.u32 3, %s50
    %s52 = sadd.s32 0, 0
    %p53 = scmp.lt.s32.totalorder %s52, 0
    %s54 = scalar_select %p53, %s52, 0
    %s55 = scalar_lea.vmem %s4, %s54
    %s56 = sadd.s32 0, 0
    %p58 = scmp.eq.s32.totalorder 0, 0
    // Predicated region
    $region22: #{tpu_custom_call.1} parent=1 // pred_check
      %p59 = pneg %p58
    $region23: #{tpu_custom_call.1} parent=1 // pred_check_branch
      %61 = sbr.rel (%p59) target = $region25
    $region24: #{tpu_custom_call.1} parent=1 // pred_region
      %vm62 = vcmask 123904
      %63 = vst.msk [vmem:[#allocation2] sm:$0x3] %vm62, 0.0
    $region25: #{tpu_custom_call.1} parent=1 // pred_fallthru
      _
    %v64 = vld [vmem:[%s49] sm:$0xff]
    %v65 = vld [vmem:[%s49 + $0x8] sm:$0xff]
    %v66 = vld [vmem:[%s49 + $0x10] sm:$0xff]
    %v67 = vpack.c.bf16 %v65, %v64
    %v68 = vpack.c.bf16 %v66, %v66
    %v69 = vld [vmem:[%s1] sm:$0xf]
    %v70 = vld [vmem:[%s1 + $0x4] sm:$0xf]
    %v71 = vld [vmem:[%s1 + $0x8] sm:$0xf]
    %v72 = vld [vmem:[%s1 + $0xc] sm:$0xf]
    %v73 = vld [vmem:[%s2] sm:$0x1]
    %v75 = vperm.slane %v73, 0
    %v81 = vunpack.c.l.b16 %v69
    %v82 = vunpack.c.l.b16 %v70
    %v83 = vunpack.c.l.b16 %v71
    %v84 = vunpack.c.l.b16 %v72
    %v85 = vpack.c.b16 %v82, %v81
    %v86 = vpack.c.b16 %v84, %v83
    %vm89 = vcmask 261120
    %v91 = vsel %vm89, %v67, 0
    %v94 = vsel %vm89, %v68, 0
    %96 = vmatpush.bf16.msra.mxu0 0
    %97 = vmatpush.bf16.msra.mxu0 0
    %98 = vmatpush.bf16.msra.mxu0 0
    %99 = vmatpush.bf16.msra.mxu0 0
    %100 = vmatpush.bf16.msra.mxu0 0
    %101 = vmatpush.bf16.msra.mxu0 0
    %102 = vmatpush.bf16.msra.mxu0 %v86
    %103 = vmatpush.bf16.msra.mxu0 %v85
    %104 = vmatmul.bf16.gmra.mxu0 %v91
    %v105 = vpop.f32.mrf.mxu0
    %v106 = vadd.f32 %v75, %v105
    %v107 = vpop.f32.mrf.mxu0
    %v108 = vadd.f32 %v75, %v107
    %109 = vmatmul.bf16.gmra.mxu0 %v94
    %v110 = vpop.f32.mrf.mxu0
    %v111 = vadd.f32 %v75, %v110
    %v112 = vpop.f32.mrf.mxu0
    %113 = vdwg.mxu0
    %v114 = vsub.f32 0.0, %v106
    %v115 = vsub.f32 0.0, %v108
    %v116 = vsub.f32 0.0, %v111
    %v117 = vmul.f32 %v114, 1.442695
    %v118 = vpow.pop %v117
    %v119 = vmul.f32 %v115, 1.442695
    %v120 = vpow.pop %v119
    %v121 = vmul.f32 %v116, 1.442695
    %v122 = vpow.pop %v121
    %v123 = vadd.f32 %v118, 1.0
    %v124 = vadd.f32 %v120, 1.0
    %v125 = vadd.f32 %v122, 1.0
    %v126 = vrcp.pop %v123
    %v127 = vrcp.pop %v124
    %v128 = vrcp.pop %v125
    %v129 = vmul.f32 %v106, %v126
    %v130 = vmul.f32 %v108, %v127
    %v131 = vmul.f32 %v111, %v128
    %v132 = vld [vmem:[%s55] sm:$0x1]
    %v133 = vlaneseq
    %v134 = vshrl.u32 %v133, 7
    %v135 = vperm.slane %v132, 0
    %vm136 = vcmp.eq.s32.totalorder %v134, %v135
    %v137 = vsel %vm136, 1, 0
    %v138 = vcvt.s32.f32 %v137
    %v139 = vpack.c.bf16 %v138, %v138
    %v140 = vld [vmem:[#allocation2] sm:$0x3]
    %v141 = vpack.c.bf16 %v130, %v129
    %v142 = vpack.c.bf16 %v131, %v131
    %vm143 = vcmask 195584
    %v145 = vsel %vm143, %v139, 0
    %vm147 = vcmask 1043456
    %v149 = vsel %vm147, %v142, 0
    %151 = vmatpush.bf16.msra.mxu0 0
    %152 = vmatpush.bf16.msra.mxu0 0
    %153 = vmatpush.bf16.msra.mxu0 0
    %154 = vmatpush.bf16.msra.mxu0 0
    %155 = vmatpush.bf16.msra.mxu0 0
    %156 = vmatpush.bf16.msra.mxu0 0
    %157 = vmatpush.bf16.msra.mxu0 %v149
    %158 = vmatpush.bf16.msra.mxu0 %v141
    %159 = vmatmul.bf16.gmra.mxu0 %v145
    %v160 = vpop.f32.mrf.mxu0
    %v161 = vadd.f32 0.0, %v160
    %v162 = vpop.f32.mrf.mxu0
    %163 = vdwg.mxu0
    %v164 = vadd.f32 %v140, %v161
    %vm165 = vcmask 123904
    %166 = vst.msk [vmem:[#allocation2] sm:$0x3] %vm165, %v164
    // Predicated region
    $region26: #{tpu_custom_call.1} parent=1 // pred_check
      %p167 = pneg %p58
    $region27: #{tpu_custom_call.1} parent=1 // pred_check_branch
      %169 = sbr.rel (%p167) target = $region29
    $region28: #{tpu_custom_call.1} parent=1 // pred_region
      %v170 = vld [vmem:[#allocation2] sm:$0x3]
      %v171 = vld [vmem:[%s3] sm:$0xff]
      %v172 = vld [vmem:[%s3 + $0x8] sm:$0xff]
      %vm173 = vcmask 130048
      %v175 = vsel %vm173, %v170, 0
      %177 = vmatpush.msra.mxu0 0.0
      %178 = vmatpush.msra.mxu0 0.0
      %179 = vmatpush.msra.mxu0 0.0
      %180 = vmatpush.msra.mxu0 0.0
      %181 = vmatpush.msra.mxu0 0.0
      %182 = vmatpush.msra.mxu0 0.0
      %183 = vmatpush.msra.mxu0 0.0
      %184 = vmatpush.msra.mxu0 0.0
      %185 = vmatpush.msra.mxu0 0.0
      %186 = vmatpush.msra.mxu0 0.0
      %187 = vmatpush.msra.mxu0 0.0
      %188 = vmatpush.msra.mxu0 0.0
      %189 = vmatpush.msra.mxu0 0.0
      %190 = vmatpush.msra.mxu0 0.0
      %191 = vmatpush.msra.mxu0 %v172
      %192 = vmatpush.msra.mxu0 %v171
      %193 = vmatmul.f32.gmra.mxu0 %v175
      %v194 = vpop.f32.mrf.mxu0
      %v195 = vadd.f32 0.0, %v194
      %196 = vdwg.mxu0
      %vm197 = vcmask 25600
      %198 = vst.msk [vmem:[#allocation3] sm:$0x3] %vm197, %v195
    $region29: #{tpu_custom_call.1} parent=1 // pred_fallthru
      _
    // Predicated region
    $region30: #{tpu_custom_call.1} parent=1 // pred_check
      _
    $region31: #{tpu_custom_call.1} parent=1 // pred_check_branch
      %200 = sbr.rel (0) target = $region33
    $region32: #{tpu_custom_call.1} parent=1 // pred_region
      %202 = vsyncadd [#allocation4], 0
      %s204 = sshll.u32 [#allocation3], 4
      %s205 = int_to_ptr.vmem [resolvable:$true] %s204
      %s206 = sshll.u32 %s5, 4
      %s207 = int_to_ptr.hbm [resolvable:$true] %s206
      %209 = dma.vmem_to_hbm [thread:$0]  %s205, 32, %s207, [#allocation4]
    $region33: #{tpu_custom_call.1} parent=1 // pred_fallthru
      _
    // Predicated region
    $region34: #{tpu_custom_call.1} parent=1 // pred_check
      _
    $region35: #{tpu_custom_call.1} parent=1 // pred_check_branch
      %211 = sbr.rel (0) target = $region37
    $region36: #{tpu_custom_call.1} parent=1 // pred_region
      %213 = dma.done [#allocation4], 32
    $region37: #{tpu_custom_call.1} parent=1 // pred_fallthru
      _
    %214 = vsyncpa [#allocation4], 1

</llo_original>
